<compile_context>
chip_gen: v7x
topology: tpu7x:2x2x1
jax: 0.10.0
libtpu: 0.0.40
codegen_flags: <defaults>
</compile_context>

<pallas_src>
import functools

import jax
import jax.numpy as jnp
from jax import lax
from jax.experimental import pallas as pl
from jax.experimental.pallas import tpu as pltpu

EPS = 1e-6
_VMEM_LIMIT = 32 * 1024 * 1024      # safe scoped-VMEM ceiling on v5e/v6e/v7x
_VMEM_BUDGET = 26 * 1024 * 1024     # what the block plan is allowed to consume
_IN_BLOCK_TARGET = 8 * 1024 * 1024  # per-buffer input block target (4-8 MiB)


# --------------------------------------------------------------------------- #
# small math helpers (only ops with rock-solid Mosaic lowerings)
# --------------------------------------------------------------------------- #
def _int_pow(x, n):
    """x**n for a Python int n >= 1 using only multiplies (VPU-friendly)."""
    acc = None
    base = x
    while n > 0:
        if n & 1:
            acc = base if acc is None else acc * base
        n >>= 1
        if n:
            base = base * base
    return acc


def _pos_pow(x, p):
    """x**p for x > 0 via exp/log (EUP); p may be static or a traced scalar."""
    return jnp.exp(jnp.log(x) * p)


def _load_clamped(x_ref, eps):
    x = x_ref[...]
    if x.dtype != jnp.float32 and x.dtype != jnp.bfloat16:
        x = x.astype(jnp.float32)
    return jnp.maximum(x, jnp.asarray(eps, x.dtype))  # clamp(min=eps)


def _accumulate_and_finalize(xp, ones_ref, o_ref, acc_ref, *, inv_p, mean_scale,
                             multi_k, hw_total, hw_blk):
    """Segmented/row sum on the MXU, then mean and **(1/p) epilogue."""
    if multi_k:
        k = pl.program_id(1)
        # Mask lanes of the (possibly OOB-padded) last spatial block.
        valid = hw_total - k * hw_blk
        lane = lax.broadcasted_iota(jnp.int32, xp.shape, dimension=1)
        xp = jnp.where(lane < valid, xp, jnp.zeros_like(xp))
        acc_ref[...] += jnp.dot(xp, ones_ref[...],
                                preferred_element_type=jnp.float32)

        @pl.when(k == pl.num_programs(1) - 1)
        def _():
            m = acc_ref[...] * jnp.float32(mean_scale)
            o_ref[...] = _pos_pow(m, inv_p).astype(o_ref.dtype)
    else:
        s = jnp.dot(xp, ones_ref[...], preferred_element_type=jnp.float32)
        m = s * jnp.float32(mean_scale)
        o_ref[...] = _pos_pow(m, inv_p).astype(o_ref.dtype)


# --------------------------------------------------------------------------- #
# kernels
# --------------------------------------------------------------------------- #
def _gem_kernel_static(x_ref, ones_ref, o_ref, *scratch, p, eps, mean_scale,
                       multi_k, hw_total, hw_blk):
    """GeM with a compile-time-constant exponent p (fast path)."""
    acc_ref = scratch[0] if scratch else None
    if multi_k:
        @pl.when(pl.program_id(1) == 0)
        def _():
            acc_ref[...] = jnp.zeros_like(acc_ref)

    x = _load_clamped(x_ref, eps)
    p_int = int(round(p))
    if abs(p - p_int) < 1e-12 and p_int >= 1:
        xp = _int_pow(x, p_int)            # pure VPU multiplies
    else:
        xp = _pos_pow(x, float(p))         # exp/log on the EUP
    _accumulate_and_finalize(xp, ones_ref, o_ref, acc_ref, inv_p=1.0 / p,
                             mean_scale=mean_scale, multi_k=multi_k,
                             hw_total=hw_total, hw_blk=hw_blk)


def _gem_kernel_dynamic(pv_ref, pf_ref, x_ref, ones_ref, o_ref, *scratch,
                        eps, mean_scale, multi_k, hw_total, hw_blk):
    """GeM with a runtime (learnable) exponent p held in SMEM.

    pv_ref: f32[2] = [p, 1/p]      (precomputed in the wrapper)
    pf_ref: i32[4] = [is_small_int, bit0(p), bit1(p), bit2(p)]
    """
    acc_ref = scratch[0] if scratch else None
    if multi_k:
        @pl.when(pl.program_id(1) == 0)
        def _():
            acc_ref[...] = jnp.zeros_like(acc_ref)

    p = pv_ref[0]
    inv_p = pv_ref[1]
    use_fast = pf_ref[0] == 1
    x = _load_clamped(x_ref, eps)

    def finish(xp):
        _accumulate_and_finalize(xp, ones_ref, o_ref, acc_ref, inv_p=inv_p,
                                 mean_scale=mean_scale, multi_k=multi_k,
                                 hw_total=hw_total, hw_blk=hw_blk)

    @pl.when(use_fast)
    def _():
        # p in {1,2,3,4}: binary exponentiation with scalar-gated selects —
        # pure VPU ops, no per-element transcendentals on the single EUP slot.
        one = jnp.asarray(1.0, x.dtype)
        x2 = x * x
        x4 = x2 * x2
        xp = jnp.where(pf_ref[1] == 1, x, one)
        xp = xp * jnp.where(pf_ref[2] == 1, x2, one)
        xp = xp * jnp.where(pf_ref[3] == 1, x4, one)
        finish(xp)

    @pl.when(jnp.logical_not(use_fast))
    def _():
        finish(_pos_pow(x, p.astype(x.dtype)))


# --------------------------------------------------------------------------- #
# wrapper
# --------------------------------------------------------------------------- #
def _choose_rows_block(rows_axis, bytes_per_row, in_target):
    """Row-block height: multiple of 8, sized to ~in_target bytes per buffer."""
    sub = 8
    r = (in_target // max(1, bytes_per_row)) // sub * sub
    r = max(sub, r)
    if r >= rows_axis:
        if rows_axis >= 2 * sub:
            # keep at least two grid steps so both v7x TensorCores get work
            half = (rows_axis + 1) // 2
            r = (half + sub - 1) // sub * sub
        else:
            r = rows_axis          # tiny: single full-dim block (always legal)
    return int(r)


def generalized_mean_pooling(x, p, *, eps=EPS, hw_block_max=4096):
    """GeM pooling over (N, C, H, W) -> (N, C, 1, 1).

    p may be a Python number (exponent folded at trace time) or a scalar/(1,)
    array (learnable parameter, read from SMEM at run time).
    """
    N, C, H, W = x.shape
    HW = H * W
    rows = N * C
    in_dtype = x.dtype
    # bf16 inputs keep the elementwise math in bf16 (VPU-native on v6e/v7x);
    # everything else computes in f32.  (v5e has no bf16 VALU but is mem-bound.)
    cdt = jnp.bfloat16 if in_dtype == jnp.bfloat16 else jnp.float32
    itemsize = jnp.dtype(in_dtype).itemsize
    cdt_size = jnp.dtype(cdt).itemsize

    hw_block_max = max(128, (int(hw_block_max) // 128) * 128)
    static_p = isinstance(p, (int, float)) and not isinstance(p, bool)

    x2 = x.reshape(rows, HW)

    packed = HW < 128
    multi_k = (not packed) and HW > hw_block_max

    if packed:
        # ---- lane-packed path: 128 channels per "super row", block-diag MXU sum
        G = 128
        super_rows = pl.cdiv(rows, G)
        rows_pad = super_rows * G
        if rows_pad != rows:
            # pad with 1.0 so padded rows stay finite (their results are dropped)
            x2 = jnp.pad(x2, ((0, rows_pad - rows), (0, 0)), constant_values=1.0)
        L = G * HW                          # packed row length; multiple of 128
        x_in = x2.reshape(super_rows, L)    # contiguous reshape (no copy if unpadded)
        lane = jnp.arange(L, dtype=jnp.int32)[:, None]
        col = jnp.arange(G, dtype=jnp.int32)[None, :]
        ones_mat = (lane // HW == col).astype(cdt)      # (L, 128) block-diagonal
        rows_axis, in_cols, w_out = super_rows, L, G
        hw_blk, num_k = L, 1
        bytes_per_row = L * itemsize
    else:
        # ---- standard path: spatial axis on lanes, all-ones MXU reduction
        x_in = x2
        rows_axis = rows
        w_out = 8                            # narrow output -> tiny writeback
        if multi_k:
            hw_blk = hw_block_max
            num_k = pl.cdiv(HW, hw_blk)
            in_cols = hw_blk
        else:
            hw_blk = HW
            num_k = 1
            in_cols = HW
        ones_mat = jnp.ones((hw_blk, w_out), dtype=cdt)
        # lane-padded bytes per row (the review's VMEM-accounting fix)
        bytes_per_row = pl.cdiv(in_cols, 128) * 128 * itemsize

    # --- block plan: ~4-8 MiB input blocks, within a 26 MiB double-buffered budget
    ones_vmem = ones_mat.shape[0] * 128 * cdt_size          # lane-padded, per buffer
    in_target = min(_IN_BLOCK_TARGET,
                    max(512 * 1024, (_VMEM_BUDGET - 2 * ones_vmem) // 2))
    R = _choose_rows_block(rows_axis, bytes_per_row + 1024, in_target)
    num_row_blocks = pl.cdiv(rows_axis, R)

    out_shape = jax.ShapeDtypeStruct((rows_axis, w_out), in_dtype)

    if multi_k:
        grid = (num_row_blocks, num_k)
        data_specs = [
            pl.BlockSpec((R, in_cols), lambda i, k: (i, k)),
            pl.BlockSpec((hw_blk, w_out), lambda i, k: (0, 0)),
        ]
        out_spec = pl.BlockSpec((R, w_out), lambda i, k: (i, 0))
        dims = ("parallel", "arbitrary")
        scratch = [pltpu.VMEM((R, w_out), jnp.float32)]
    else:
        grid = (num_row_blocks,)
        data_specs = [
            pl.BlockSpec((R, in_cols), lambda i: (i, 0)),
            pl.BlockSpec((in_cols, w_out), lambda i: (0, 0)),
        ]
        out_spec = pl.BlockSpec((R, w_out), lambda i: (i, 0))
        dims = ("parallel",)
        scratch = []

    cparams = pltpu.CompilerParams(
        dimension_semantics=dims,
        vmem_limit_bytes=_VMEM_LIMIT,
    )
    cost = pl.CostEstimate(
        flops=rows * HW * (4 + 2 * w_out),
        transcendentals=(0 if static_p else 2 * rows * HW) + 2 * rows,
        bytes_accessed=rows * HW * itemsize + rows_axis * w_out * itemsize,
    )
    kernel_kwargs = dict(eps=float(eps), mean_scale=1.0 / HW, multi_k=multi_k,
                         hw_total=HW, hw_blk=hw_blk)
    common = dict(out_shape=out_shape, grid=grid, out_specs=out_spec,
                  scratch_shapes=scratch, compiler_params=cparams,
                  cost_estimate=cost)

    if static_p:
        kernel = functools.partial(_gem_kernel_static, p=float(p), **kernel_kwargs)
        out = pl.pallas_call(kernel, in_specs=data_specs, **common)(x_in, ones_mat)
    else:
        # Precompute the scalar plumbing in plain JAX so the kernel only does
        # integer compares on SMEM scalars (no scalar float transcendentals).
        p_f = jnp.asarray(p, jnp.float32).reshape(())
        p_round = jnp.round(p_f)
        p_i = p_round.astype(jnp.int32)
        is_fast = (jnp.abs(p_f - p_round) < 1e-6) & (p_i >= 1) & (p_i <= 4)
        p_vals = jnp.stack([p_f, 1.0 / p_f])                               # f32[2]
        p_flags = jnp.stack([is_fast.astype(jnp.int32),
                             (p_i >> 0) & 1, (p_i >> 1) & 1, (p_i >> 2) & 1])  # i32[4]
        smem_spec = pl.BlockSpec(memory_space=pltpu.MemorySpace.SMEM)
        kernel = functools.partial(_gem_kernel_dynamic, **kernel_kwargs)
        out = pl.pallas_call(kernel, in_specs=[smem_spec, smem_spec] + data_specs,
                             **common)(p_vals, p_flags, x_in, ones_mat)

    if packed:
        y = out.reshape(rows_pad)[:rows]     # lane-dense slab -> per-channel values
    else:
        y = out[:, 0]
    return y.reshape(N, C, 1, 1)


# --------------------------------------------------------------------------- #
# demo / self-test
# --------------------------------------------------------------------------- #
if __name__ == "__main__":
    key = jax.random.PRNGKey(0)
    k1, k2 = jax.random.split(key)
    p_value = 3.0
    p_param = jnp.ones((1,), dtype=jnp.float32) * p_value   # nn.Parameter(ones*3)

    def ref_gem(x, p):
        xc = jnp.maximum(x.astype(jnp.float32), EPS)
        m = jnp.mean(xc ** p, axis=(2, 3), keepdims=True)
        return (m ** (1.0 / p)).astype(x.dtype)

    checks = []

    # 1) standard path (HW >= 128), static p
    x1 = jax.random.uniform(k1, (2, 4, 16, 16), dtype=jnp.float32)
    checks.append((generalized_mean_pooling(x1, p_value), ref_gem(x1, p_value)))

    # 2) standard path, learnable p (SMEM) -> runtime integer fast branch
    checks.append((generalized_mean_pooling(x1, p_param), ref_gem(x1, p_value)))

    # 3) lane-packed path (HW < 128), static p
    x2 = jax.random.uniform(k2, (2, 4, 7, 7), dtype=jnp.float32)
    checks.append((generalized_mean_pooling(x2, p_value), ref_gem(x2, p_value)))

    # 4) lane-packed path, learnable non-integer p -> generic exp/log branch
    checks.append((generalized_mean_pooling(x2, jnp.asarray(2.5, jnp.float32)),
                   ref_gem(x2, 2.5)))

    # 5) spatial-split path (trailing "arbitrary" axis) with a ragged last block
    x3 = jax.random.uniform(k1, (2, 4, 18, 18), dtype=jnp.float32)
    checks.append((generalized_mean_pooling(x3, p_value, hw_block_max=128),
                   ref_gem(x3, p_value)))

    jax.block_until_ready([c[0] for c in checks])
    for got, want in checks:
        assert got.shape == want.shape
        assert jnp.allclose(got, want, rtol=5e-4, atol=2e-5)

    print("KERNEL_OK")
</pallas_src>

<mosaic_0001>
module attributes {stable_mosaic.version = 11 : i64} {
  func.func @_gem_kernel_static(%arg0: i32, %arg1: memref<8x256xf32, #tpu.memory_space<vmem>>, %arg2: memref<256x8xf32, #tpu.memory_space<vmem>>, %arg3: memref<8x8xf32, #tpu.memory_space<vmem>>) attributes {dimension_semantics = [#tpu.dimension_semantics<parallel>], iteration_bounds = array<i64: 1>, scalar_prefetch = 0 : i64, scratch_operands = 0 : i64, tpu.core_type = #tpu.core_type<tc>, window_params = [{transform_indices = @transform_0, window_bounds = array<i64: 8, 256>}, {pipeline_mode = #tpu.pipeline_mode<synchronous>, transform_indices = @transform_1, window_bounds = array<i64: 256, 8>}, {transform_indices = @transform_2, window_bounds = array<i64: 8, 8>}]} {
    %c0 = arith.constant 0 : index
    %c0_0 = arith.constant 0 : index
    %0 = vector.load %arg1[%c0, %c0_0] : memref<8x256xf32, #tpu.memory_space<vmem>>, vector<8x256xf32>
    %cst = arith.constant 9.99999997E-7 : f32
    %1 = vector.broadcast %cst : f32 to vector<8x256xf32>
    %2 = arith.maximumf %0, %1 : vector<8x256xf32>
    %3 = arith.mulf %2, %2 : vector<8x256xf32>
    %4 = arith.mulf %2, %3 : vector<8x256xf32>
    %c0_1 = arith.constant 0 : index
    %c0_2 = arith.constant 0 : index
    %5 = vector.load %arg2[%c0_1, %c0_2] : memref<256x8xf32, #tpu.memory_space<vmem>>, vector<256x8xf32>
    %cst_3 = arith.constant dense<0.000000e+00> : vector<8x8xf32>
    %6 = tpu.matmul %4, %5, %cst_3 {dimension_numbers = #tpu.dot_dimension_numbers<[1], [0], [0], [1], [0, 0, 1, 1], [], []>} : vector<8x256xf32>, vector<256x8xf32>, vector<8x8xf32> -> vector<8x8xf32>
    %cst_4 = arith.constant 3.906250e-03 : f32
    %7 = vector.broadcast %cst_4 : f32 to vector<8x8xf32>
    %8 = arith.mulf %6, %7 : vector<8x8xf32>
    %9 = math.log %8 : vector<8x8xf32>
    %cst_5 = arith.constant 0.333333343 : f32
    %10 = vector.broadcast %cst_5 : f32 to vector<8x8xf32>
    %11 = arith.mulf %9, %10 : vector<8x8xf32>
    %12 = math.exp %11 : vector<8x8xf32>
    %c0_6 = arith.constant 0 : index
    %c0_7 = arith.constant 0 : index
    %13 = vector.load %arg3[%c0_6, %c0_7] : memref<8x8xf32, #tpu.memory_space<vmem>>, vector<8x8xf32>
    tpu.vector_store %arg3[%c0_6, %c0_7], %12 {strides = array<i32>} : memref<8x8xf32, #tpu.memory_space<vmem>>, vector<8x8xf32>,
    return
  }
  func.func @transform_0(%arg0: i32) -> (i32, i32) {
    %c0_i32 = arith.constant 0 : i32
    %c0_i32_0 = arith.constant 0 : i32
    return %arg0, %c0_i32 : i32, i32
  }
  func.func @transform_1(%arg0: i32) -> (i32, i32) {
    %c0_i32 = arith.constant 0 : i32
    %c0_i32_0 = arith.constant 0 : i32
    %c0_i32_1 = arith.constant 0 : i32
    return %c0_i32, %c0_i32_0 : i32, i32
  }
  func.func @transform_2(%arg0: i32) -> (i32, i32) {
    %c0_i32 = arith.constant 0 : i32
    %c0_i32_0 = arith.constant 0 : i32
    return %arg0, %c0_i32 : i32, i32
  }
}

</mosaic_0001>

<llo_original>
// kernel: tpu_custom_call.1
$region0: #{tpu_custom_call.1}
  #allocation0 [shape = 'u32[]', space=smem, size = 0x4, offset = 0x4, fixed_abs, tag = 'smem constant byte address 0x4 - core index']
  #allocation1 [shape = 'u32[144,128]{1,0:T(1,128)}', space=vmem, size = 0x12000, scoped, tag = 'internal scratch']
  %s0 = inlined_call_operand.vmem [shape: f32[8,256], index: 0, kind: input, shape index: {}]
  %s1 = inlined_call_operand.vmem [shape: f32[256,8], index: 1, kind: input, shape index: {}]
  %s2 = inlined_call_operand.hbm [shape: f32[8,8], index: 2, kind: output, shape index: {}]
  %s3 = sld [smem:[#allocation0]]
  $region18: #{tpu_custom_call.1} parent=0
    _
  %s5 = ssub.s32 1, %s3
  %s6 = scalar_select 0, %s5, %s3
  $region1: #{tpu_custom_call.1} parent=0
    #allocation2 [shape = 'u8[4096]{0}', space=vmem, size = 0x1000, scoped, tag = 'output window, operand 0, single buffered']
    #allocation3 [shape = 's32[1]{0}', space=sflag, size = 0x4, scoped, tag = 'scoped memory for tpu_custom_call.1']
    %7 = vsyncpa [#allocation3], 0
    // Predicated region
    $region2: #{tpu_custom_call.1} parent=1 // pred_check
      _
    $region3: #{tpu_custom_call.1} parent=1 // pred_check_branch
      %9 = sbr.rel (0) target = $region5
    $region4: #{tpu_custom_call.1} parent=1 // pred_region
      _
    $region5: #{tpu_custom_call.1} parent=1 // pred_fallthru
      _
    // Predicated region
    $region6: #{tpu_custom_call.1} parent=1 // pred_check
      _
    $region7: #{tpu_custom_call.1} parent=1 // pred_check_branch
      %11 = sbr.rel (0) target = $region9
    $region8: #{tpu_custom_call.1} parent=1 // pred_region
      _
    $region9: #{tpu_custom_call.1} parent=1 // pred_fallthru
      _
    %v12 = vld [vmem:[%s0] sm:$0xff]
    %v13 = vld [vmem:[%s0 + $0x8] sm:$0xff]
    %v14 = vmax.f32 %v12, 1e-06
    %v15 = vmax.f32 %v13, 1e-06
    %v16 = vmul.f32 %v14, %v14
    %v17 = vmul.f32 %v15, %v15
    %v18 = vmul.f32 %v14, %v16
    %v19 = vmul.f32 %v15, %v17
    %v20 = vld [vmem:[%s1] sm:$0xff]
    %v21 = vld [vmem:[%s1 + $0x8] sm:$0xff]
    %v22 = vld [vmem:[%s1 + $0x10] sm:$0xff]
    %v23 = vld [vmem:[%s1 + $0x18] sm:$0xff]
    %v24 = vld [vmem:[%s1 + $0x20] sm:$0xff]
    %v25 = vld [vmem:[%s1 + $0x28] sm:$0xff]
    %v26 = vld [vmem:[%s1 + $0x30] sm:$0xff]
    %v27 = vld [vmem:[%s1 + $0x38] sm:$0xff]
    %v28 = vld [vmem:[%s1 + $0x40] sm:$0xff]
    %v29 = vld [vmem:[%s1 + $0x48] sm:$0xff]
    %v30 = vld [vmem:[%s1 + $0x50] sm:$0xff]
    %v31 = vld [vmem:[%s1 + $0x58] sm:$0xff]
    %v32 = vld [vmem:[%s1 + $0x60] sm:$0xff]
    %v33 = vld [vmem:[%s1 + $0x68] sm:$0xff]
    %v34 = vld [vmem:[%s1 + $0x70] sm:$0xff]
    %v35 = vld [vmem:[%s1 + $0x78] sm:$0xff]
    %v36 = vld [vmem:[%s1 + $0x80] sm:$0xff]
    %v37 = vld [vmem:[%s1 + $0x88] sm:$0xff]
    %v38 = vld [vmem:[%s1 + $0x90] sm:$0xff]
    %v39 = vld [vmem:[%s1 + $0x98] sm:$0xff]
    %v40 = vld [vmem:[%s1 + $0xa0] sm:$0xff]
    %v41 = vld [vmem:[%s1 + $0xa8] sm:$0xff]
    %v42 = vld [vmem:[%s1 + $0xb0] sm:$0xff]
    %v43 = vld [vmem:[%s1 + $0xb8] sm:$0xff]
    %v44 = vld [vmem:[%s1 + $0xc0] sm:$0xff]
    %v45 = vld [vmem:[%s1 + $0xc8] sm:$0xff]
    %v46 = vld [vmem:[%s1 + $0xd0] sm:$0xff]
    %v47 = vld [vmem:[%s1 + $0xd8] sm:$0xff]
    %v48 = vld [vmem:[%s1 + $0xe0] sm:$0xff]
    %v49 = vld [vmem:[%s1 + $0xe8] sm:$0xff]
    %v50 = vld [vmem:[%s1 + $0xf0] sm:$0xff]
    %v51 = vld [vmem:[%s1 + $0xf8] sm:$0xff]
    %52 = vmatprep.subr.mxu0 0.0
    %53 = vmatpush1.msra.mxu0 %v20
    %54 = vmatprep.subr.mxu0 0.0
    %55 = vmatpush1.msra.mxu0 %v21
    %56 = vmatprep.subr.mxu0 0.0
    %57 = vmatpush1.msra.mxu0 %v22
    %58 = vmatprep.subr.mxu0 0.0
    %59 = vmatpush1.msra.mxu0 %v23
    %60 = vmatprep.subr.mxu0 0.0
    %61 = vmatpush1.msra.mxu0 %v24
    %62 = vmatprep.subr.mxu0 0.0
    %63 = vmatpush1.msra.mxu0 %v25
    %64 = vmatprep.subr.mxu0 0.0
    %65 = vmatpush1.msra.mxu0 %v26
    %66 = vmatprep.subr.mxu0 0.0
    %67 = vmatpush1.msra.mxu0 %v27
    %68 = vmatprep.subr.mxu0 0.0
    %69 = vmatpush1.msra.mxu0 %v28
    %70 = vmatprep.subr.mxu0 0.0
    %71 = vmatpush1.msra.mxu0 %v29
    %72 = vmatprep.subr.mxu0 0.0
    %73 = vmatpush1.msra.mxu0 %v30
    %74 = vmatprep.subr.mxu0 0.0
    %75 = vmatpush1.msra.mxu0 %v31
    %76 = vmatprep.subr.mxu0 0.0
    %77 = vmatpush1.msra.mxu0 %v32
    %78 = vmatprep.subr.mxu0 0.0
    %79 = vmatpush1.msra.mxu0 %v33
    %80 = vmatprep.subr.mxu0 0.0
    %81 = vmatpush1.msra.mxu0 %v34
    %82 = vmatprep.subr.mxu0 0.0
    %83 = vmatpush1.msra.mxu0 %v35
    %84 = vmatprep.subr.mxu0 0.0
    %85 = vmatpush1.msra.mxu0 %v36
    %86 = vmatprep.subr.mxu0 0.0
    %87 = vmatpush1.msra.mxu0 %v37
    %88 = vmatprep.subr.mxu0 0.0
    %89 = vmatpush1.msra.mxu0 %v38
    %90 = vmatprep.subr.mxu0 0.0
    %91 = vmatpush1.msra.mxu0 %v39
    %92 = vmatprep.subr.mxu0 0.0
    %93 = vmatpush1.msra.mxu0 %v40
    %94 = vmatprep.subr.mxu0 0.0
    %95 = vmatpush1.msra.mxu0 %v41
    %96 = vmatprep.subr.mxu0 0.0
    %97 = vmatpush1.msra.mxu0 %v42
    %98 = vmatprep.subr.mxu0 0.0
    %99 = vmatpush1.msra.mxu0 %v43
    %100 = vmatprep.subr.mxu0 0.0
    %101 = vmatpush1.msra.mxu0 %v44
    %102 = vmatprep.subr.mxu0 0.0
    %103 = vmatpush1.msra.mxu0 %v45
    %104 = vmatprep.subr.mxu0 0.0
    %105 = vmatpush1.msra.mxu0 %v46
    %106 = vmatprep.subr.mxu0 0.0
    %107 = vmatpush1.msra.mxu0 %v47
    %108 = vmatprep.subr.mxu0 0.0
    %109 = vmatpush1.msra.mxu0 %v48
    %110 = vmatprep.subr.mxu0 0.0
    %111 = vmatpush1.msra.mxu0 %v49
    %112 = vmatprep.subr.mxu0 0.0
    %113 = vmatpush1.msra.mxu0 %v50
    %114 = vmatprep.subr.mxu0 0.0
    %115 = vmatpush1.msra.mxu0 %v51
    %116 = vmatprep.mubr.f32.mxu0 %v19
    %117 = vmatmul.mubr.f32.gmra.mrb[0].mxu0 %v18
    %v118 = vpop.f32.mrb[0].mxu0
    %v119 = vadd.f32 0.0, %v118
    %v120 = vpop.f32.mrb[0].mxu0
    %121 = vdwg.mxu0
    %v122 = vmul.f32 %v119, 0.00390625
    %v123 = vlog2.pop %v122
    %v124 = vmul.f32 %v123, 0.6931472
    %v125 = vmul.f32 %v124, 0.33333334
    %v126 = vmul.f32 %v125, 1.442695
    %v127 = vpow.pop %v126
    %vm128 = vcmask 64512
    %129 = vst.msk [vmem:[#allocation2] sm:$0xff] %vm128, %v127
    // Predicated region
    $region10: #{tpu_custom_call.1} parent=1 // pred_check
      _
    $region11: #{tpu_custom_call.1} parent=1 // pred_check_branch
      %131 = sbr.rel (0) target = $region13
    $region12: #{tpu_custom_call.1} parent=1 // pred_region
      %s133 = ssub.s32 128, 128
      %134 = vsyncadd [#allocation3], %s133
      %s136 = sshll.u32 [#allocation2], 4
      %s137 = int_to_ptr.vmem [resolvable:$true] %s136
      %139 = dma.vmem_to_hbm [thread:$0]  %s137, 128, %s2, [#allocation3]
    $region13: #{tpu_custom_call.1} parent=1 // pred_fallthru
      _
    // Predicated region
    $region14: #{tpu_custom_call.1} parent=1 // pred_check
      _
    $region15: #{tpu_custom_call.1} parent=1 // pred_check_branch
      %141 = sbr.rel (0) target = $region17
    $region16: #{tpu_custom_call.1} parent=1 // pred_region
      %142 = dma.done [#allocation3], 128
    $region17: #{tpu_custom_call.1} parent=1 // pred_fallthru
      _
    %143 = vsyncpa [#allocation3], 1

</llo_original>
